<compile_context>
chip_gen: v6e
topology: v6e:2x2x1
jax: 0.10.0
libtpu: 0.0.40
codegen_flags: <defaults>
</compile_context>

<pallas_src>
import functools

import jax
import jax.numpy as jnp
from jax.experimental import pallas as pl
from jax.experimental.pallas import tpu as pltpu

# Channel sizes of BGRXYMLPNet.
_C_IN = 5
_C1, _C2, _C3, _C_OUT = 128, 32, 32, 2

# Row offsets of the packed per-layer biases inside the (200, 1) bias array.
_B1_OFF = 0
_B2_OFF = _B1_OFF + _C1          # 128
_B3_OFF = _B2_OFF + _C2          # 160
_B4_OFF = _B3_OFF + _C3          # 192
_B_ROWS = 200                    # 194 rounded up to a multiple of 8


def _mlp_kernel(x_ref, w1_ref, w2_ref, w3_ref, w4_ref, b_ref, o_ref):
    """Per-pixel MLP with pixels on the 128-lane axis (feature-major).

    All matmuls run bf16 x bf16 -> f32 accumulate on the MXU; bias + ReLU in
    f32; activations re-cast to bf16 before the next layer.
    """
    x = x_ref[0].astype(jnp.bfloat16)          # (5, T) bf16
    b = b_ref[...]                             # (200, 1) f32 packed biases

    # Layer 1: 5 -> 128 (BN scale folded into w1), bias + ReLU.
    h = jnp.dot(w1_ref[...], x, preferred_element_type=jnp.float32)   # (128, T) f32
    h = jnp.maximum(h + b[_B1_OFF:_B1_OFF + _C1], 0.0).astype(jnp.bfloat16)

    # Layer 2: 128 -> 32.
    h = jnp.dot(w2_ref[...], h, preferred_element_type=jnp.float32)   # (32, T) f32
    h = jnp.maximum(h + b[_B2_OFF:_B2_OFF + _C2], 0.0).astype(jnp.bfloat16)

    # Layer 3: 32 -> 32.
    h = jnp.dot(w3_ref[...], h, preferred_element_type=jnp.float32)   # (32, T) f32
    h = jnp.maximum(h + b[_B3_OFF:_B3_OFF + _C3], 0.0).astype(jnp.bfloat16)

    # Layer 4: 32 -> 2, bias only (no BN / ReLU), f32 output.
    h = jnp.dot(w4_ref[...], h, preferred_element_type=jnp.float32)   # (2, T) f32
    o_ref[0] = h + b[_B4_OFF:_B4_OFF + _C_OUT]


def _const_spec(shape):
    # Parameter arrays: same full block at every grid point (fetched once,
    # stays resident in VMEM).
    return pl.BlockSpec(shape, lambda n, p: (0,) * len(shape))


def _ceil_to(a, m):
    return ((a + m - 1) // m) * m


@functools.partial(jax.jit, static_argnames=("tile_cols",))
def bgrxy_mlp_forward(x_nchw, params, tile_cols=8192):
    """Forward pass of BGRXYMLPNet (inference mode, BN folded).

    x_nchw: (N, 5, H, W) float32
    params: dict from make_params (bf16 folded weights + packed f32 bias).
    returns: (N, 2, H, W) float32
    """
    N, C, H, W = x_nchw.shape
    assert C == _C_IN
    assert tile_cols >= 128 and tile_cols % 128 == 0
    P = H * W

    # NCHW -> (N, C, P): pure reshape (no transpose, no extra HBM traffic).
    x = x_nchw.reshape(N, C, P)

    # Pixel-tile selection (no HBM pad / slice in the wrapper):
    #   * T is a multiple of 128 (lane-dense) unless one full-extent block
    #     (T == P) covers the whole image; a ragged last tile is handled by
    #     Pallas (masked partial block), never by jnp.pad.
    #   * When N == 1, split pixels into >= 2 tiles so both v7x TensorCores
    #     get a parallel grid step.
    min_tiles = 2 if (N == 1 and P > 128) else 1
    T = min(tile_cols, _ceil_to(pl.cdiv(P, min_tiles), 128))
    if T >= P:
        T = P                                  # single full-extent block
    grid = (N, pl.cdiv(P, T))

    in_specs = [
        pl.BlockSpec((1, _C_IN, T), lambda n, p: (n, 0, p)),   # x tile
        _const_spec(params["w1"].shape),
        _const_spec(params["w2"].shape),
        _const_spec(params["w3"].shape),
        _const_spec(params["w4"].shape),
        _const_spec(params["bias"].shape),
    ]
    out_specs = pl.BlockSpec((1, _C_OUT, T), lambda n, p: (n, 0, p))

    out = pl.pallas_call(
        _mlp_kernel,
        out_shape=jax.ShapeDtypeStruct((N, _C_OUT, P), jnp.float32),
        grid_spec=pltpu.PrefetchScalarGridSpec(
            num_scalar_prefetch=0,
            grid=grid,
            in_specs=in_specs,
            out_specs=out_specs,
        ),
        compiler_params=pltpu.CompilerParams(
            dimension_semantics=("parallel", "parallel"),
            vmem_limit_bytes=32 * 1024 * 1024),
    )(x, params["w1"], params["w2"], params["w3"], params["w4"],
      params["bias"])

    # Restore (N, 2, H, W) — pure reshape, no copy.
    return out.reshape(N, _C_OUT, H, W)


def _fold_bn_into_conv(w, b, gamma, beta, mean, var, eps=1e-5):
    """Fold Conv bias + BatchNorm (eval mode) into the weight and a bias.

    y = gamma * (W x + b - mean) / sqrt(var + eps) + beta
      = (s * W) x + [beta + (b - mean) * s],  s = gamma / sqrt(var + eps)
    """
    s = gamma / jnp.sqrt(var + eps)
    return w * s[:, None], beta + (b - mean) * s


def make_params(key):
    """Deterministic synthetic parameters matching BGRXYMLPNet's shapes.

    Weights are BN-folded and stored in bf16 (MXU-native); the packed bias
    stays f32.
    """
    dims = [(_C_IN, _C1), (_C1, _C2), (_C2, _C3), (_C3, _C_OUT)]
    keys = iter(jax.random.split(key, 20))   # 3 layers * 6 keys + 1 layer * 2

    weights, biases = [], []
    for li, (cin, cout) in enumerate(dims, start=1):
        scale = 1.0 / (cin ** 0.5)
        # Conv2d(kernel_size=1) weight (cout, cin, 1, 1) == dense (cout, cin).
        w = jax.random.uniform(next(keys), (cout, cin), jnp.float32,
                               -scale, scale)
        b = jax.random.uniform(next(keys), (cout,), jnp.float32,
                               -scale, scale)
        if li < 4:
            # BatchNorm2d(cout), eval mode with synthetic running stats.
            gamma = 1.0 + 0.1 * jax.random.normal(next(keys), (cout,),
                                                  jnp.float32)
            beta = 0.1 * jax.random.normal(next(keys), (cout,), jnp.float32)
            mean = 0.05 * jax.random.normal(next(keys), (cout,), jnp.float32)
            var = jnp.abs(1.0 + 0.1 * jax.random.normal(next(keys), (cout,),
                                                        jnp.float32))
            w, b = _fold_bn_into_conv(w, b, gamma, beta, mean, var)
        weights.append(w.astype(jnp.bfloat16))
        biases.append(b.astype(jnp.float32))

    bias_packed = jnp.concatenate(biases)                         # (194,)
    bias_packed = jnp.pad(bias_packed, (0, _B_ROWS - bias_packed.shape[0]))
    bias_packed = bias_packed.reshape(_B_ROWS, 1)

    return {"w1": weights[0], "w2": weights[1], "w3": weights[2],
            "w4": weights[3], "bias": bias_packed}


def _reference_forward(x_nchw, params, match_kernel_precision):
    """Pure-JAX reference (same folded-BN math) for correctness checking.

    match_kernel_precision=True mirrors the kernel's bf16-matmul / f32-accum
    path exactly; False uses full f32 math (looser comparison tolerance).
    """
    N, C, H, W = x_nchw.shape
    b = params["bias"][:, 0]
    t1 = b[_B1_OFF:_B1_OFF + _C1]
    t2 = b[_B2_OFF:_B2_OFF + _C2]
    t3 = b[_B3_OFF:_B3_OFF + _C3]
    b4 = b[_B4_OFF:_B4_OFF + _C_OUT]
    dt = jnp.bfloat16 if match_kernel_precision else jnp.float32
    w1 = params["w1"].astype(dt)
    w2 = params["w2"].astype(dt)
    w3 = params["w3"].astype(dt)
    w4 = params["w4"].astype(dt)

    h = jnp.transpose(x_nchw, (0, 2, 3, 1)).reshape(-1, C).astype(dt)
    h = jnp.dot(h, w1.T, preferred_element_type=jnp.float32)
    h = jnp.maximum(h + t1, 0.0).astype(dt)
    h = jnp.dot(h, w2.T, preferred_element_type=jnp.float32)
    h = jnp.maximum(h + t2, 0.0).astype(dt)
    h = jnp.dot(h, w3.T, preferred_element_type=jnp.float32)
    h = jnp.maximum(h + t3, 0.0).astype(dt)
    h = jnp.dot(h, w4.T, preferred_element_type=jnp.float32) + b4
    return jnp.transpose(h.reshape(N, H, W, _C_OUT), (0, 3, 1, 2))


if __name__ == "__main__":
    key = jax.random.PRNGKey(0)
    k_x, k_p = jax.random.split(key)

    # Small NCHW input consistent with the module: batch=2, channels=5, 16x16.
    x = jax.random.normal(k_x, (2, _C_IN, 16, 16), jnp.float32)
    params = make_params(k_p)

    out = bgrxy_mlp_forward(x, params)
    out = jax.block_until_ready(out)
    assert out.shape == (2, _C_OUT, 16, 16)
    assert out.dtype == jnp.float32

    # Tight check against a reference that mirrors the kernel's bf16 path.
    ref_bf16 = _reference_forward(x, params, match_kernel_precision=True)
    err_bf16 = float(jnp.max(jnp.abs(out - ref_bf16)))
    assert jnp.allclose(out, ref_bf16, atol=2e-3, rtol=2e-3), err_bf16

    # Loose sanity check against full-f32 math (bf16 quantization error only).
    ref_f32 = _reference_forward(x, params, match_kernel_precision=False)
    err_f32 = float(jnp.max(jnp.abs(out - ref_f32)))
    assert jnp.allclose(out, ref_f32, atol=5e-2, rtol=5e-2), err_f32

    print("KERNEL_OK")
</pallas_src>

<mosaic_0001>
module attributes {stable_mosaic.version = 11 : i64} {
  func.func @_mlp_kernel(%arg0: i32, %arg1: i32, %arg2: memref<1x5x256xf32, #tpu.memory_space<vmem>>, %arg3: memref<128x5xbf16, #tpu.memory_space<vmem>>, %arg4: memref<32x128xbf16, #tpu.memory_space<vmem>>, %arg5: memref<32x32xbf16, #tpu.memory_space<vmem>>, %arg6: memref<2x32xbf16, #tpu.memory_space<vmem>>, %arg7: memref<200x1xf32, #tpu.memory_space<vmem>>, %arg8: memref<1x2x256xf32, #tpu.memory_space<vmem>>) attributes {dimension_semantics = [#tpu.dimension_semantics<parallel>, #tpu.dimension_semantics<parallel>], iteration_bounds = array<i64: 2, 1>, scalar_prefetch = 0 : i64, scratch_operands = 0 : i64, tpu.core_type = #tpu.core_type<tc>, window_params = [{transform_indices = @transform_0, window_bounds = array<i64: 1, 5, 256>}, {pipeline_mode = #tpu.pipeline_mode<synchronous>, transform_indices = @transform_1, window_bounds = array<i64: 128, 5>}, {pipeline_mode = #tpu.pipeline_mode<synchronous>, transform_indices = @transform_2, window_bounds = array<i64: 32, 128>}, {pipeline_mode = #tpu.pipeline_mode<synchronous>, transform_indices = @transform_3, window_bounds = array<i64: 32, 32>}, {pipeline_mode = #tpu.pipeline_mode<synchronous>, transform_indices = @transform_4, window_bounds = array<i64: 2, 32>}, {pipeline_mode = #tpu.pipeline_mode<synchronous>, transform_indices = @transform_5, window_bounds = array<i64: 200, 1>}, {transform_indices = @transform_6, window_bounds = array<i64: 1, 2, 256>}]} {
    %c0 = arith.constant 0 : index
    %c0_0 = arith.constant 0 : index
    %c0_1 = arith.constant 0 : index
    %0 = vector.load %arg2[%c0, %c0_0, %c0_1] : memref<1x5x256xf32, #tpu.memory_space<vmem>>, vector<1x5x256xf32>
    %1 = vector.shape_cast %0 : vector<1x5x256xf32> to vector<5x256xf32>
    %2 = arith.truncf %1 : vector<5x256xf32> to vector<5x256xbf16>
    %c0_2 = arith.constant 0 : index
    %c0_3 = arith.constant 0 : index
    %3 = vector.load %arg7[%c0_2, %c0_3] : memref<200x1xf32, #tpu.memory_space<vmem>>, vector<200x1xf32>
    %c0_4 = arith.constant 0 : index
    %c0_5 = arith.constant 0 : index
    %4 = vector.load %arg3[%c0_4, %c0_5] : memref<128x5xbf16, #tpu.memory_space<vmem>>, vector<128x5xbf16>
    %cst = arith.constant dense<0.000000e+00> : vector<128x256xf32>
    %5 = tpu.matmul %4, %2, %cst {dimension_numbers = #tpu.dot_dimension_numbers<[1], [0], [0], [1], [0, 0, 1, 1], [], []>} : vector<128x5xbf16>, vector<5x256xbf16>, vector<128x256xf32> -> vector<128x256xf32>
    %6 = vector.extract_strided_slice %3 {offsets = [0, 0], sizes = [128, 1], strides = [1, 1]} : vector<200x1xf32> to vector<128x1xf32>
    %7 = vector.broadcast %6 : vector<128x1xf32> to vector<128x256xf32>
    %8 = arith.addf %5, %7 : vector<128x256xf32>
    %cst_6 = arith.constant 0.000000e+00 : f32
    %9 = vector.broadcast %cst_6 : f32 to vector<128x256xf32>
    %10 = arith.maximumf %8, %9 : vector<128x256xf32>
    %11 = arith.truncf %10 : vector<128x256xf32> to vector<128x256xbf16>
    %c0_7 = arith.constant 0 : index
    %c0_8 = arith.constant 0 : index
    %12 = vector.load %arg4[%c0_7, %c0_8] : memref<32x128xbf16, #tpu.memory_space<vmem>>, vector<32x128xbf16>
    %cst_9 = arith.constant dense<0.000000e+00> : vector<32x256xf32>
    %13 = tpu.matmul %12, %11, %cst_9 {dimension_numbers = #tpu.dot_dimension_numbers<[1], [0], [0], [1], [0, 0, 1, 1], [], []>} : vector<32x128xbf16>, vector<128x256xbf16>, vector<32x256xf32> -> vector<32x256xf32>
    %14 = vector.extract_strided_slice %3 {offsets = [128, 0], sizes = [32, 1], strides = [1, 1]} : vector<200x1xf32> to vector<32x1xf32>
    %15 = vector.broadcast %14 : vector<32x1xf32> to vector<32x256xf32>
    %16 = arith.addf %13, %15 : vector<32x256xf32>
    %cst_10 = arith.constant 0.000000e+00 : f32
    %17 = vector.broadcast %cst_10 : f32 to vector<32x256xf32>
    %18 = arith.maximumf %16, %17 : vector<32x256xf32>
    %19 = arith.truncf %18 : vector<32x256xf32> to vector<32x256xbf16>
    %c0_11 = arith.constant 0 : index
    %c0_12 = arith.constant 0 : index
    %20 = vector.load %arg5[%c0_11, %c0_12] : memref<32x32xbf16, #tpu.memory_space<vmem>>, vector<32x32xbf16>
    %cst_13 = arith.constant dense<0.000000e+00> : vector<32x256xf32>
    %21 = tpu.matmul %20, %19, %cst_13 {dimension_numbers = #tpu.dot_dimension_numbers<[1], [0], [0], [1], [0, 0, 1, 1], [], []>} : vector<32x32xbf16>, vector<32x256xbf16>, vector<32x256xf32> -> vector<32x256xf32>
    %22 = vector.extract_strided_slice %3 {offsets = [160, 0], sizes = [32, 1], strides = [1, 1]} : vector<200x1xf32> to vector<32x1xf32>
    %23 = vector.broadcast %22 : vector<32x1xf32> to vector<32x256xf32>
    %24 = arith.addf %21, %23 : vector<32x256xf32>
    %cst_14 = arith.constant 0.000000e+00 : f32
    %25 = vector.broadcast %cst_14 : f32 to vector<32x256xf32>
    %26 = arith.maximumf %24, %25 : vector<32x256xf32>
    %27 = arith.truncf %26 : vector<32x256xf32> to vector<32x256xbf16>
    %c0_15 = arith.constant 0 : index
    %c0_16 = arith.constant 0 : index
    %28 = vector.load %arg6[%c0_15, %c0_16] : memref<2x32xbf16, #tpu.memory_space<vmem>>, vector<2x32xbf16>
    %cst_17 = arith.constant dense<0.000000e+00> : vector<2x256xf32>
    %29 = tpu.matmul %28, %27, %cst_17 {dimension_numbers = #tpu.dot_dimension_numbers<[1], [0], [0], [1], [0, 0, 1, 1], [], []>} : vector<2x32xbf16>, vector<32x256xbf16>, vector<2x256xf32> -> vector<2x256xf32>
    %30 = vector.extract_strided_slice %3 {offsets = [192, 0], sizes = [2, 1], strides = [1, 1]} : vector<200x1xf32> to vector<2x1xf32>
    %31 = vector.broadcast %30 : vector<2x1xf32> to vector<2x256xf32>
    %32 = arith.addf %29, %31 : vector<2x256xf32>
    %c0_18 = arith.constant 0 : index
    %c0_19 = arith.constant 0 : index
    %c0_20 = arith.constant 0 : index
    %33 = vector.load %arg8[%c0_18, %c0_19, %c0_20] : memref<1x2x256xf32, #tpu.memory_space<vmem>>, vector<1x2x256xf32>
    %34 = vector.shape_cast %33 : vector<1x2x256xf32> to vector<2x256xf32>
    %35 = vector.shape_cast %32 : vector<2x256xf32> to vector<1x2x256xf32>
    tpu.vector_store %arg8[%c0_18, %c0_19, %c0_20], %35 {strides = array<i32>} : memref<1x2x256xf32, #tpu.memory_space<vmem>>, vector<1x2x256xf32>,
    return
  }
  func.func @transform_0(%arg0: i32, %arg1: i32) -> (i32, i32, i32) {
    %c0_i32 = arith.constant 0 : i32
    %c0_i32_0 = arith.constant 0 : i32
    return %arg0, %c0_i32, %arg1 : i32, i32, i32
  }
  func.func @transform_1(%arg0: i32, %arg1: i32) -> (i32, i32) {
    %c0_i32 = arith.constant 0 : i32
    %c0_i32_0 = arith.constant 0 : i32
    %c0_i32_1 = arith.constant 0 : i32
    return %c0_i32, %c0_i32_0 : i32, i32
  }
  func.func @transform_2(%arg0: i32, %arg1: i32) -> (i32, i32) {
    %c0_i32 = arith.constant 0 : i32
    %c0_i32_0 = arith.constant 0 : i32
    %c0_i32_1 = arith.constant 0 : i32
    return %c0_i32, %c0_i32_0 : i32, i32
  }
  func.func @transform_3(%arg0: i32, %arg1: i32) -> (i32, i32) {
    %c0_i32 = arith.constant 0 : i32
    %c0_i32_0 = arith.constant 0 : i32
    %c0_i32_1 = arith.constant 0 : i32
    return %c0_i32, %c0_i32_0 : i32, i32
  }
  func.func @transform_4(%arg0: i32, %arg1: i32) -> (i32, i32) {
    %c0_i32 = arith.constant 0 : i32
    %c0_i32_0 = arith.constant 0 : i32
    %c0_i32_1 = arith.constant 0 : i32
    return %c0_i32, %c0_i32_0 : i32, i32
  }
  func.func @transform_5(%arg0: i32, %arg1: i32) -> (i32, i32) {
    %c0_i32 = arith.constant 0 : i32
    %c0_i32_0 = arith.constant 0 : i32
    %c0_i32_1 = arith.constant 0 : i32
    return %c0_i32, %c0_i32_0 : i32, i32
  }
  func.func @transform_6(%arg0: i32, %arg1: i32) -> (i32, i32, i32) {
    %c0_i32 = arith.constant 0 : i32
    %c0_i32_0 = arith.constant 0 : i32
    return %arg0, %c0_i32, %arg1 : i32, i32, i32
  }
}

</mosaic_0001>

<llo_original>
// kernel: bgrxy_mlp_forward.1
$region0: #{bgrxy_mlp_forward.1}
  #allocation0 [shape = 'u32[]', space=smem, size = 0x4, offset = 0x4, fixed_abs, tag = 'smem constant byte address 0x4 - core index']
  #allocation1 [shape = 'u32[144,128]{1,0:T(1,128)}', space=vmem, size = 0x12000, scoped, tag = 'internal scratch']
  %s0 = inlined_call_operand.vmem [shape: f32[2,5,256], index: 0, kind: input, shape index: {}]
  %s1 = inlined_call_operand.vmem [shape: bf16[128,5], index: 1, kind: input, shape index: {}]
  %s2 = inlined_call_operand.vmem [shape: bf16[32,128], index: 2, kind: input, shape index: {}]
  %s3 = inlined_call_operand.vmem [shape: bf16[32,32], index: 3, kind: input, shape index: {}]
  %s4 = inlined_call_operand.vmem [shape: bf16[2,32], index: 4, kind: input, shape index: {}]
  %s5 = inlined_call_operand.vmem [shape: f32[200,1], index: 5, kind: input, shape index: {}]
  %s6 = inlined_call_operand.vmem [shape: f32[2,2,256], index: 6, kind: output, shape index: {}]
  %s7 = sld [smem:[#allocation0]]
  $region57: #{bgrxy_mlp_forward.1} parent=0
    _
  %s9 = ssub.s32 1, %s7
  %s10 = scalar_select 0, %s9, %s7
  loop: start=0, step=1, limit=4
  $region2: #{bgrxy_mlp_forward.1} parent=0 // loop_pre_header
    _
  $region3: #{bgrxy_mlp_forward.1} parent=0 // loop_header
    %s12 = sphi 0, %s16
    %p13 = scmp.ge.s32.totalorder %s12, 4
    %s19 = sphi 0, %s31
    %s20 = sphi 0, %s27
    %s21 = sphi 0, %s19
    %s22 = sphi 0, %s20
    %s23 = sphi 0, %s21
    %s24 = sphi 0, %s22
    %s36 = sphi 0, %s38
    %s39 = sphi 0, %s36
    %s40 = sphi 0, %s39
    %s56 = sphi 0, %s40
    %s60 = sphi 0, %s60
    %s62 = sphi 0, %s60
    %s63 = sphi 0, %s62
    %s77 = sphi 0, %s63
    %s81 = sphi 0, %s81
    %s83 = sphi 0, %s81
    %s84 = sphi 0, %s83
    %s98 = sphi 0, %s84
    %s102 = sphi 0, %s102
    %s104 = sphi 0, %s102
    %s105 = sphi 0, %s104
    %s119 = sphi 0, %s105
    %s123 = sphi 0, %s123
    %s125 = sphi 0, %s123
    %s126 = sphi 0, %s125
    %s140 = sphi 0, %s126
    %s144 = sphi 0, %s144
    %s146 = sphi 0, %s144
    %s147 = sphi 0, %s146
    %s161 = sphi 0, %s147
    %s169 = sphi 0, %s171
    %s172 = sphi 0, %s169
    %s173 = sphi 0, %s172
    %s189 = sphi 0, %s173
  $region4: #{bgrxy_mlp_forward.1} parent=0 // loop_header_branch
    %15 = sbr.rel (%p13) target = $region8
  $region5: #{bgrxy_mlp_forward.1} parent=0 // loop_body
    %s17 = ssub.s32 %s12, 1
    %s18 = ssub.s32 %s12, 2
    %s25 = sadd.s32 1, %s20
    %p26 = scmp.ge.s32.totalorder %s25, 1
    %s27 = scalar_select %p26, 0, %s25
    %s28 = sadd.s32 1, %s19
    %s29 = scalar_select %p26, %s28, %s19
    %p30 = scmp.ge.s32.totalorder %s29, 2
    %s31 = scalar_select %p30, 0, %s29
    %s32 = ssub.s32 %s19, %s31
    %s33 = ssub.s32 %s20, %s27
    %s34 = sor.u32 %s32, %s33
    %p35 = scmp.eq.s32.totalorder %s34, 0
    %s37 = sadd.s32 %s36, 1
    %s38 = scalar_select %p35, %s36, %s37
    %p41 = pneg %p35
    %p42 = scmp.eq.s32.totalorder %s12, 1
    %p43 = por %p41, %p42
    %p44 = scmp.ne.s32.totalorder %s36, %s39
    %p45 = scmp.eq.s32.totalorder %s12, 0
    %p46 = por %p44, %p45
    %p47 = scmp.ne.s32.totalorder %s36, %s39
    %p48 = scmp.eq.s32.totalorder %s17, 1
    %p49 = por %p47, %p48
    %p50 = scmp.ne.s32.totalorder %s39, %s40
    %p51 = scmp.eq.s32.totalorder %s17, 0
    %p52 = por %p50, %p51
    %p53 = scmp.ne.s32.totalorder %s39, %s40
    %p54 = scmp.eq.s32.totalorder %s18, 1
    %p55 = por %p53, %p54
    %p57 = scmp.ne.s32.totalorder %s40, %s56
    %p58 = scmp.eq.s32.totalorder %s18, 0
    %p59 = por %p57, %p58
    %s61 = sadd.s32 %s60, 1
    %p64 = scmp.eq.s32.totalorder %s12, 1
    %p65 = scmp.ne.s32.totalorder %s60, %s62
    %p66 = scmp.eq.s32.totalorder %s12, 0
    %p67 = por %p65, %p66
    %p68 = scmp.ne.s32.totalorder %s60, %s62
    %p69 = scmp.eq.s32.totalorder %s17, 1
    %p70 = por %p68, %p69
    %p71 = scmp.ne.s32.totalorder %s62, %s63
    %p72 = scmp.eq.s32.totalorder %s17, 0
    %p73 = por %p71, %p72
    %p74 = scmp.ne.s32.totalorder %s62, %s63
    %p75 = scmp.eq.s32.totalorder %s18, 1
    %p76 = por %p74, %p75
    %p78 = scmp.ne.s32.totalorder %s63, %s77
    %p79 = scmp.eq.s32.totalorder %s18, 0
    %p80 = por %p78, %p79
    %s82 = sadd.s32 %s81, 1
    %p85 = scmp.eq.s32.totalorder %s12, 1
    %p86 = scmp.ne.s32.totalorder %s81, %s83
    %p87 = scmp.eq.s32.totalorder %s12, 0
    %p88 = por %p86, %p87
    %p89 = scmp.ne.s32.totalorder %s81, %s83
    %p90 = scmp.eq.s32.totalorder %s17, 1
    %p91 = por %p89, %p90
    %p92 = scmp.ne.s32.totalorder %s83, %s84
    %p93 = scmp.eq.s32.totalorder %s17, 0
    %p94 = por %p92, %p93
    %p95 = scmp.ne.s32.totalorder %s83, %s84
    %p96 = scmp.eq.s32.totalorder %s18, 1
    %p97 = por %p95, %p96
    %p99 = scmp.ne.s32.totalorder %s84, %s98
    %p100 = scmp.eq.s32.totalorder %s18, 0
    %p101 = por %p99, %p100
    %s103 = sadd.s32 %s102, 1
    %p106 = scmp.eq.s32.totalorder %s12, 1
    %p107 = scmp.ne.s32.totalorder %s102, %s104
    %p108 = scmp.eq.s32.totalorder %s12, 0
    %p109 = por %p107, %p108
    %p110 = scmp.ne.s32.totalorder %s102, %s104
    %p111 = scmp.eq.s32.totalorder %s17, 1
    %p112 = por %p110, %p111
    %p113 = scmp.ne.s32.totalorder %s104, %s105
    %p114 = scmp.eq.s32.totalorder %s17, 0
    %p115 = por %p113, %p114
    %p116 = scmp.ne.s32.totalorder %s104, %s105
    %p117 = scmp.eq.s32.totalorder %s18, 1
    %p118 = por %p116, %p117
    %p120 = scmp.ne.s32.totalorder %s105, %s119
    %p121 = scmp.eq.s32.totalorder %s18, 0
    %p122 = por %p120, %p121
    %s124 = sadd.s32 %s123, 1
    %p127 = scmp.eq.s32.totalorder %s12, 1
    %p128 = scmp.ne.s32.totalorder %s123, %s125
    %p129 = scmp.eq.s32.totalorder %s12, 0
    %p130 = por %p128, %p129
    %p131 = scmp.ne.s32.totalorder %s123, %s125
    %p132 = scmp.eq.s32.totalorder %s17, 1
    %p133 = por %p131, %p132
    %p134 = scmp.ne.s32.totalorder %s125, %s126
    %p135 = scmp.eq.s32.totalorder %s17, 0
    %p136 = por %p134, %p135
    %p137 = scmp.ne.s32.totalorder %s125, %s126
    %p138 = scmp.eq.s32.totalorder %s18, 1
    %p139 = por %p137, %p138
    %p141 = scmp.ne.s32.totalorder %s126, %s140
    %p142 = scmp.eq.s32.totalorder %s18, 0
    %p143 = por %p141, %p142
    %s145 = sadd.s32 %s144, 1
    %p148 = scmp.eq.s32.totalorder %s12, 1
    %p149 = scmp.ne.s32.totalorder %s144, %s146
    %p150 = scmp.eq.s32.totalorder %s12, 0
    %p151 = por %p149, %p150
    %p152 = scmp.ne.s32.totalorder %s144, %s146
    %p153 = scmp.eq.s32.totalorder %s17, 1
    %p154 = por %p152, %p153
    %p155 = scmp.ne.s32.totalorder %s146, %s147
    %p156 = scmp.eq.s32.totalorder %s17, 0
    %p157 = por %p155, %p156
    %p158 = scmp.ne.s32.totalorder %s146, %s147
    %p159 = scmp.eq.s32.totalorder %s18, 1
    %p160 = por %p158, %p159
    %p162 = scmp.ne.s32.totalorder %s147, %s161
    %p163 = scmp.eq.s32.totalorder %s18, 0
    %p164 = por %p162, %p163
    %s165 = ssub.s32 %s19, %s31
    %s166 = ssub.s32 %s20, %s27
    %s167 = sor.u32 %s165, %s166
    %p168 = scmp.eq.s32.totalorder %s167, 0
    %s170 = sadd.s32 %s169, 1
    %s171 = scalar_select %p168, %s169, %s170
    %p174 = pneg %p168
    %p175 = scmp.eq.s32.totalorder %s12, 1
    %p176 = por %p174, %p175
    %p177 = scmp.ne.s32.totalorder %s169, %s172
    %p178 = scmp.eq.s32.totalorder %s12, 0
    %p179 = por %p177, %p178
    %p180 = scmp.ne.s32.totalorder %s169, %s172
    %p181 = scmp.eq.s32.totalorder %s17, 1
    %p182 = por %p180, %p181
    %p183 = scmp.ne.s32.totalorder %s172, %s173
    %p184 = scmp.eq.s32.totalorder %s17, 0
    %p185 = por %p183, %p184
    %p186 = scmp.ne.s32.totalorder %s172, %s173
    %p187 = scmp.eq.s32.totalorder %s18, 1
    %p188 = por %p186, %p187
    %p190 = scmp.ne.s32.totalorder %s173, %s189
    %p191 = scmp.eq.s32.totalorder %s18, 0
    %p192 = por %p190, %p191
    %p193 = scmp.le.s32.totalorder 1, %s12
    %p194 = scmp.lt.s32.totalorder %s12, 3
    %p195 = pnand %p193, %p194
    %p196 = pneg %p195
    // Predicated region
    $region9: #{bgrxy_mlp_forward.1} parent=5 // pred_check
      _
    $region10: #{bgrxy_mlp_forward.1} parent=5 // pred_check_branch
      %198 = sbr.rel (%p195) target = $region12
    $region11: #{bgrxy_mlp_forward.1} parent=5 // pred_region
      %s199 = ssub.s32 %s12, 1
      // Predicated region
      $region13: #{bgrxy_mlp_forward.1} parent=11 // pred_check
        %p200 = pneg %p73
      $region14: #{bgrxy_mlp_forward.1} parent=11 // pred_check_branch
        %202 = sbr.rel (%p200) target = $region16
      $region15: #{bgrxy_mlp_forward.1} parent=11 // pred_region
        _
      $region16: #{bgrxy_mlp_forward.1} parent=11 // pred_fallthru
        _
      // Predicated region
      $region17: #{bgrxy_mlp_forward.1} parent=11 // pred_check
        %p203 = pneg %p94
      $region18: #{bgrxy_mlp_forward.1} parent=11 // pred_check_branch
        %205 = sbr.rel (%p203) target = $region20
      $region19: #{bgrxy_mlp_forward.1} parent=11 // pred_region
        _
      $region20: #{bgrxy_mlp_forward.1} parent=11 // pred_fallthru
        _
      // Predicated region
      $region21: #{bgrxy_mlp_forward.1} parent=11 // pred_check
        %p206 = pneg %p115
      $region22: #{bgrxy_mlp_forward.1} parent=11 // pred_check_branch
        %208 = sbr.rel (%p206) target = $region24
      $region23: #{bgrxy_mlp_forward.1} parent=11 // pred_region
        _
      $region24: #{bgrxy_mlp_forward.1} parent=11 // pred_fallthru
        _
      // Predicated region
      $region25: #{bgrxy_mlp_forward.1} parent=11 // pred_check
        %p209 = pneg %p136
      $region26: #{bgrxy_mlp_forward.1} parent=11 // pred_check_branch
        %211 = sbr.rel (%p209) target = $region28
      $region27: #{bgrxy_mlp_forward.1} parent=11 // pred_region
        _
      $region28: #{bgrxy_mlp_forward.1} parent=11 // pred_fallthru
        _
      // Predicated region
      $region29: #{bgrxy_mlp_forward.1} parent=11 // pred_check
        %p212 = pneg %p157
      $region30: #{bgrxy_mlp_forward.1} parent=11 // pred_check_branch
        %214 = sbr.rel (%p212) target = $region32
      $region31: #{bgrxy_mlp_forward.1} parent=11 // pred_region
        _
      $region32: #{bgrxy_mlp_forward.1} parent=11 // pred_fallthru
        _
    $region12: #{bgrxy_mlp_forward.1} parent=5 // pred_fallthru
      _
    %p215 = scmp.lt.s32.totalorder %s12, 2
    // Predicated region
    $region33: #{bgrxy_mlp_forward.1} parent=5 // pred_check
      %p216 = pneg %p215
    $region34: #{bgrxy_mlp_forward.1} parent=5 // pred_check_branch
      %218 = sbr.rel (%p216) target = $region36
    $region35: #{bgrxy_mlp_forward.1} parent=5 // pred_region
      // Predicated region
      $region37: #{bgrxy_mlp_forward.1} parent=35 // pred_check
        %p219 = pneg %p46
      $region38: #{bgrxy_mlp_forward.1} parent=35 // pred_check_branch
        %221 = sbr.rel (%p219) target = $region40
      $region39: #{bgrxy_mlp_forward.1} parent=35 // pred_region
        %s222 = smul.u32 2, %s20
        %p223 = scmp.lt.s32.totalorder %s19, 1
        %s224 = scalar_select %p223, %s19, 1
        %p225 = scmp.lt.s32.totalorder %s222, 1
        %s226 = scalar_select %p225, %s222, 1
        %s227 = smul.addr %s224, 2
        %s228 = sadd.s32 %s226, %s227
        %s229 = smul.addr %s228, 8
        %s230 = scalar_lea.vmem %s0, %s229
        %s231 = smul.u32 2, %s20
      $region40: #{bgrxy_mlp_forward.1} parent=35 // pred_fallthru
        _
    $region36: #{bgrxy_mlp_forward.1} parent=5 // pred_fallthru
      _
    %p232 = scmp.le.s32.totalorder 1, %s12
    %p233 = scmp.lt.s32.totalorder %s12, 3
    %p234 = pnand %p232, %p233
    %p235 = pneg %p234
    // Predicated region
    $region41: #{bgrxy_mlp_forward.1} parent=5 // pred_check
      _
    $region42: #{bgrxy_mlp_forward.1} parent=5 // pred_check_branch
      %237 = sbr.rel (%p234) target = $region44
    $region43: #{bgrxy_mlp_forward.1} parent=5 // pred_region
      %s238 = ssub.s32 %s12, 1
      %s239 = smul.u32 2, %s22
      %p240 = scmp.lt.s32.totalorder %s21, 1
      %s241 = scalar_select %p240, %s21, 1
      %p242 = scmp.lt.s32.totalorder %s239, 1
      %s243 = scalar_select %p242, %s239, 1
      %s244 = smul.addr %s241, 2
      %s245 = sadd.s32 %s243, %s244
      %s246 = smul.addr %s245, 8
      %s247 = scalar_lea.vmem %s0, %s246
      %p248 = pneg %p52
      %p249 = pneg %p49
      %p250 = pneg %p73
      %p251 = pneg %p70
      %p252 = pneg %p94
      %p253 = pneg %p91
      %p254 = pneg %p115
      %p255 = pneg %p112
      %p256 = pneg %p136
      %p257 = pneg %p133
      %p258 = pneg %p157
      %p259 = pneg %p154
      %p260 = pneg %p185
      %p261 = pneg %p182
      %s262 = smul.u32 2, %s22
      %p263 = scmp.lt.s32.totalorder %s21, 1
      %s264 = scalar_select %p263, %s21, 1
      %p265 = scmp.lt.s32.totalorder %s262, 1
      %s266 = scalar_select %p265, %s262, 1
      %s267 = smul.addr %s264, 2
      %s268 = sadd.s32 %s266, %s267
      %s269 = smul.addr %s268, 2
      %s270 = scalar_lea.vmem %s6, %s269
      %s271 = smul.u32 2, %s22
      %p272 = scmp.lt.s32.totalorder %s21, 1
      %s273 = scalar_select %p272, %s21, 1
      %p274 = scmp.lt.s32.totalorder %s271, 1
      %s275 = scalar_select %p274, %s271, 1
      %s276 = smul.addr %s273, 2
      %s277 = sadd.s32 %s275, %s276
      %s278 = smul.addr %s277, 8
      %s279 = scalar_lea.vmem %s0, %s278
      %s280 = smul.u32 2, %s22
      %s281 = smul.u32 2, %s22
      %p282 = scmp.lt.s32.totalorder %s21, 1
      %s283 = scalar_select %p282, %s21, 1
      %p284 = scmp.lt.s32.totalorder %s281, 1
      %s285 = scalar_select %p284, %s281, 1
      %s286 = smul.addr %s283, 2
      %s287 = sadd.s32 %s285, %s286
      %s288 = smul.addr %s287, 2
      %s289 = scalar_lea.vmem %s6, %s288
      %s290 = smul.u32 2, %s22
      %v292 = vld [vmem:[%s279] sm:$0x1f]
      %v293 = vld [vmem:[%s279 + $0x8] sm:$0x1f]
      %v294 = vpack.c.bf16 %v292, %v292
      %v295 = vpack.c.bf16 %v293, %v293
      %v296 = vld [vmem:[%s5] sm:$0xff]
      %v297 = vld [vmem:[%s5 + $0x8] sm:$0xff]
      %v298 = vld [vmem:[%s5 + $0x10] sm:$0xff]
      %v299 = vld [vmem:[%s5 + $0x18] sm:$0xff]
      %v300 = vld [vmem:[%s5 + $0x20] sm:$0xff]
      %v301 = vld [vmem:[%s5 + $0x28] sm:$0xff]
      %v302 = vld [vmem:[%s5 + $0x30] sm:$0xff]
      %v303 = vld [vmem:[%s5 + $0x38] sm:$0xff]
      %v304 = vld [vmem:[%s5 + $0x40] sm:$0xff]
      %v305 = vld [vmem:[%s5 + $0x48] sm:$0xff]
      %v306 = vld [vmem:[%s5 + $0x50] sm:$0xff]
      %v307 = vld [vmem:[%s5 + $0x58] sm:$0xff]
      %v308 = vld [vmem:[%s5 + $0x60] sm:$0xff]
      %v309 = vld [vmem:[%s5 + $0x68] sm:$0xff]
      %v310 = vld [vmem:[%s5 + $0x70] sm:$0xff]
      %v311 = vld [vmem:[%s5 + $0x78] sm:$0xff]
      %v312 = vld [vmem:[%s5 + $0x80] sm:$0xff]
      %v313 = vld [vmem:[%s5 + $0x88] sm:$0xff]
      %v314 = vld [vmem:[%s5 + $0x90] sm:$0xff]
      %v315 = vld [vmem:[%s5 + $0x98] sm:$0xff]
      %v316 = vld [vmem:[%s5 + $0xa0] sm:$0xff]
      %v317 = vld [vmem:[%s5 + $0xa8] sm:$0xff]
      %v318 = vld [vmem:[%s5 + $0xb0] sm:$0xff]
      %v319 = vld [vmem:[%s5 + $0xb8] sm:$0xff]
      %v320 = vld [vmem:[%s5 + $0xc0] sm:$0xff]
      %v321 = vld [vmem:[%s1] sm:$0xf]
      %v322 = vld [vmem:[%s1 + $0x4] sm:$0xf]
      %v323 = vld [vmem:[%s1 + $0x8] sm:$0xf]
      %v324 = vld [vmem:[%s1 + $0xc] sm:$0xf]
      %v325 = vld [vmem:[%s1 + $0x10] sm:$0xf]
      %v326 = vld [vmem:[%s1 + $0x14] sm:$0xf]
      %v327 = vld [vmem:[%s1 + $0x18] sm:$0xf]
      %v328 = vld [vmem:[%s1 + $0x1c] sm:$0xf]
      %v329 = vld [vmem:[%s1 + $0x20] sm:$0xf]
      %v330 = vld [vmem:[%s1 + $0x24] sm:$0xf]
      %v331 = vld [vmem:[%s1 + $0x28] sm:$0xf]
      %v332 = vld [vmem:[%s1 + $0x2c] sm:$0xf]
      %v333 = vld [vmem:[%s1 + $0x30] sm:$0xf]
      %v334 = vld [vmem:[%s1 + $0x34] sm:$0xf]
      %v335 = vld [vmem:[%s1 + $0x38] sm:$0xf]
      %v336 = vld [vmem:[%s1 + $0x3c] sm:$0xf]
      %338 = vset.pattern.permute.xlu0 0
      %339 = vperm.xlu0 %338, %v296
      %v340 = vpop.permute.xlu0 %339
      %343 = vset.pattern.permute.xlu0 0
      %344 = vperm.xlu0 %343, %v297
      %v345 = vpop.permute.xlu0 %344
      %348 = vset.pattern.permute.xlu0 0
      %349 = vperm.xlu0 %348, %v298
      %v350 = vpop.permute.xlu0 %349
      %353 = vset.pattern.permute.xlu0 0
      %354 = vperm.xlu0 %353, %v299
      %v355 = vpop.permute.xlu0 %354
      %358 = vset.pattern.permute.xlu0 0
      %359 = vperm.xlu0 %358, %v300
      %v360 = vpop.permute.xlu0 %359
      %363 = vset.pattern.permute.xlu0 0
      %364 = vperm.xlu0 %363, %v301
      %v365 = vpop.permute.xlu0 %364
      %368 = vset.pattern.permute.xlu0 0
      %369 = vperm.xlu0 %368, %v302
      %v370 = vpop.permute.xlu0 %369
      %373 = vset.pattern.permute.xlu0 0
      %374 = vperm.xlu0 %373, %v303
      %v375 = vpop.permute.xlu0 %374
      %378 = vset.pattern.permute.xlu0 0
      %379 = vperm.xlu0 %378, %v304
      %v380 = vpop.permute.xlu0 %379
      %383 = vset.pattern.permute.xlu0 0
      %384 = vperm.xlu0 %383, %v305
      %v385 = vpop.permute.xlu0 %384
      %388 = vset.pattern.permute.xlu0 0
      %389 = vperm.xlu0 %388, %v306
      %v390 = vpop.permute.xlu0 %389
      %393 = vset.pattern.permute.xlu0 0
      %394 = vperm.xlu0 %393, %v307
      %v395 = vpop.permute.xlu0 %394
      %398 = vset.pattern.permute.xlu0 0
      %399 = vperm.xlu0 %398, %v308
      %v400 = vpop.permute.xlu0 %399
      %403 = vset.pattern.permute.xlu0 0
      %404 = vperm.xlu0 %403, %v309
      %v405 = vpop.permute.xlu0 %404
      %408 = vset.pattern.permute.xlu0 0
      %409 = vperm.xlu0 %408, %v310
      %v410 = vpop.permute.xlu0 %409
      %413 = vset.pattern.permute.xlu0 0
      %414 = vperm.xlu0 %413, %v311
      %v415 = vpop.permute.xlu0 %414
      %v433 = vunpack.c.l.b16 %v321
      %v434 = vunpack.c.l.b16 %v322
      %v435 = vunpack.c.l.b16 %v323
      %v436 = vunpack.c.l.b16 %v324
      %v437 = vunpack.c.l.b16 %v325
      %v438 = vunpack.c.l.b16 %v326
      %v439 = vunpack.c.l.b16 %v327
      %v440 = vunpack.c.l.b16 %v328
      %v441 = vunpack.c.l.b16 %v329
      %v442 = vunpack.c.l.b16 %v330
      %v443 = vunpack.c.l.b16 %v331
      %v444 = vunpack.c.l.b16 %v332
      %v445 = vunpack.c.l.b16 %v333
      %v446 = vunpack.c.l.b16 %v334
      %v447 = vunpack.c.l.b16 %v335
      %v448 = vunpack.c.l.b16 %v336
      %v449 = vpack.c.b16 %v434, %v433
      %v450 = vpack.c.b16 %v436, %v435
      %v451 = vpack.c.b16 %v438, %v437
      %v452 = vpack.c.b16 %v440, %v439
      %v453 = vpack.c.b16 %v442, %v441
      %v454 = vpack.c.b16 %v444, %v443
      %v455 = vpack.c.b16 %v446, %v445
      %v456 = vpack.c.b16 %v448, %v447
      %vm457 = vcmask 39936
      %v459 = vsel %vm457, %v449, 0
      %v462 = vsel %vm457, %v450, 0
      %v465 = vsel %vm457, %v451, 0
      %v468 = vsel %vm457, %v452, 0
      %v471 = vsel %vm457, %v453, 0
      %v474 = vsel %vm457, %v454, 0
      %v477 = vsel %vm457, %v455, 0
      %v480 = vsel %vm457, %v456, 0
      %vm482 = vcmask 1041408
      %vm483 = vcmask 1042432
      %v484 = vsel %vm482, 4294967295, 65535
      %v485 = vsel %vm483, %v484, 0
      %v487 = vand.u32 %v294, %v485
      %v490 = vand.u32 %v295, %v485
      %492 = vmatprep.subr.bf16.mxu0 0
      %493 = vmatpush1.bf16.msra.mxu0 0
      %494 = vmatprep.subr.bf16.mxu0 0
      %495 = vmatpush1.bf16.msra.mxu0 0
      %496 = vmatprep.subr.bf16.mxu0 0
      %497 = vmatpush1.bf16.msra.mxu0 0
      %498 = vmatprep.subr.bf16.mxu0 0
      %499 = vmatpush1.bf16.msra.mxu0 0
      %500 = vmatprep.subr.bf16.mxu0 0
      %501 = vmatpush1.bf16.msra.mxu0 0
      %502 = vmatprep.subr.bf16.mxu0 0
      %503 = vmatpush1.bf16.msra.mxu0 0
      %504 = vmatprep.subr.bf16.mxu0 0
      %505 = vmatpush1.bf16.msra.mxu0 0
      %506 = vmatprep.subr.bf16.mxu0 %v490
      %507 = vmatpush1.bf16.msra.mxu0 %v487
      %508 = vmatprep.subr.bf16.mxu0 0
      %509 = vmatpush2.bf16.msra.mxu0 0
      %510 = vmatprep.subr.bf16.mxu0 0
      %511 = vmatpush2.bf16.msra.mxu0 0
      %512 = vmatprep.subr.bf16.mxu0 0
      %513 = vmatpush2.bf16.msra.mxu0 0
      %514 = vmatprep.subr.bf16.mxu0 0
      %515 = vmatpush2.bf16.msra.mxu0 0
      %516 = vmatprep.subr.bf16.mxu0 0
      %517 = vmatpush2.bf16.msra.mxu0 0
      %518 = vmatprep.subr.bf16.mxu0 0
      %519 = vmatpush2.bf16.msra.mxu0 0
      %520 = vmatprep.subr.bf16.mxu0 0
      %521 = vmatpush2.bf16.msra.mxu0 0
      %522 = vmatprep.subr.bf16.mxu0 0
      %523 = vmatpush2.bf16.msra.mxu0 0
      %524 = vmatprep.mubr.bf16.mxu0 0
      %525 = vmatmul.mubr.bf16.gmra.mxu0 %v459
      %v526 = vpop.f32.mrf.mxu0
      %v527 = vadd.f32 %v340, %v526
      %v528 = vpop.f32.mrf.mxu0
      %v529 = vadd.f32 %v340, %v528
      %v530 = vpop.f32.mrf.mxu0
      %v531 = vadd.f32 %v345, %v530
      %v532 = vpop.f32.mrf.mxu0
      %v533 = vadd.f32 %v345, %v532
      %534 = vmatprep.mubr.bf16.mxu0 0
      %535 = vmatmul.mubr.bf16.gmra.mxu0 %v462
      %v536 = vpop.f32.mrf.mxu0
      %v537 = vadd.f32 %v350, %v536
      %v538 = vpop.f32.mrf.mxu0
      %v539 = vadd.f32 %v350, %v538
      %v540 = vpop.f32.mrf.mxu0
      %v541 = vadd.f32 %v355, %v540
      %v542 = vpop.f32.mrf.mxu0
      %v543 = vadd.f32 %v355, %v542
      %544 = vmatprep.mubr.bf16.mxu0 0
      %545 = vmatmul.mubr.bf16.gmra.mxu0 %v465
      %v546 = vpop.f32.mrf.mxu0
      %v547 = vadd.f32 %v360, %v546
      %v548 = vpop.f32.mrf.mxu0
      %v549 = vadd.f32 %v360, %v548
      %v550 = vpop.f32.mrf.mxu0
      %v551 = vadd.f32 %v365, %v550
      %v552 = vpop.f32.mrf.mxu0
      %v553 = vadd.f32 %v365, %v552
      %554 = vmatprep.mubr.bf16.mxu0 0
      %555 = vmatmul.mubr.bf16.gmra.mxu0 %v468
      %v556 = vpop.f32.mrf.mxu0
      %v557 = vadd.f32 %v370, %v556
      %v558 = vpop.f32.mrf.mxu0
      %v559 = vadd.f32 %v370, %v558
      %v560 = vpop.f32.mrf.mxu0
      %v561 = vadd.f32 %v375, %v560
      %v562 = vpop.f32.mrf.mxu0
      %v563 = vadd.f32 %v375, %v562
      %564 = vmatprep.mubr.bf16.mxu0 0
      %565 = vmatmul.mubr.bf16.gmra.mxu0 %v471
      %v566 = vpop.f32.mrf.mxu0
      %v567 = vadd.f32 %v380, %v566
      %v568 = vpop.f32.mrf.mxu0
      %v569 = vadd.f32 %v380, %v568
      %v570 = vpop.f32.mrf.mxu0
      %v571 = vadd.f32 %v385, %v570
      %v572 = vpop.f32.mrf.mxu0
      %v573 = vadd.f32 %v385, %v572
      %574 = vmatprep.mubr.bf16.mxu0 0
      %575 = vmatmul.mubr.bf16.gmra.mxu0 %v474
      %v576 = vpop.f32.mrf.mxu0
      %v577 = vadd.f32 %v390, %v576
      %v578 = vpop.f32.mrf.mxu0
      %v579 = vadd.f32 %v390, %v578
      %v580 = vpop.f32.mrf.mxu0
      %v581 = vadd.f32 %v395, %v580
      %v582 = vpop.f32.mrf.mxu0
      %v583 = vadd.f32 %v395, %v582
      %584 = vmatprep.mubr.bf16.mxu0 0
      %585 = vmatmul.mubr.bf16.gmra.mxu0 %v477
      %v586 = vpop.f32.mrf.mxu0
      %v587 = vadd.f32 %v400, %v586
      %v588 = vpop.f32.mrf.mxu0
      %v589 = vadd.f32 %v400, %v588
      %v590 = vpop.f32.mrf.mxu0
      %v591 = vadd.f32 %v405, %v590
      %v592 = vpop.f32.mrf.mxu0
      %v593 = vadd.f32 %v405, %v592
      %594 = vmatprep.mubr.bf16.mxu0 0
      %595 = vmatmul.mubr.bf16.gmra.mxu0 %v480
      %v596 = vpop.f32.mrf.mxu0
      %v597 = vadd.f32 %v410, %v596
      %v598 = vpop.f32.mrf.mxu0
      %v599 = vadd.f32 %v410, %v598
      %v600 = vpop.f32.mrf.mxu0
      %v601 = vadd.f32 %v415, %v600
      %v602 = vpop.f32.mrf.mxu0
      %v603 = vadd.f32 %v415, %v602
      %604 = vdwg.mxu0
      %v605 = vmax.f32 %v527, 0.0
      %v606 = vmax.f32 %v529, 0.0
      %v607 = vmax.f32 %v531, 0.0
      %v608 = vmax.f32 %v533, 0.0
      %v609 = vmax.f32 %v537, 0.0
      %v610 = vmax.f32 %v539, 0.0
      %v611 = vmax.f32 %v541, 0.0
      %v612 = vmax.f32 %v543, 0.0
      %v613 = vmax.f32 %v547, 0.0
      %v614 = vmax.f32 %v549, 0.0
      %v615 = vmax.f32 %v551, 0.0
      %v616 = vmax.f32 %v553, 0.0
      %v617 = vmax.f32 %v557, 0.0
      %v618 = vmax.f32 %v559, 0.0
      %v619 = vmax.f32 %v561, 0.0
      %v620 = vmax.f32 %v563, 0.0
      %v621 = vmax.f32 %v567, 0.0
      %v622 = vmax.f32 %v569, 0.0
      %v623 = vmax.f32 %v571, 0.0
      %v624 = vmax.f32 %v573, 0.0
      %v625 = vmax.f32 %v577, 0.0
      %v626 = vmax.f32 %v579, 0.0
      %v627 = vmax.f32 %v581, 0.0
      %v628 = vmax.f32 %v583, 0.0
      %v629 = vmax.f32 %v587, 0.0
      %v630 = vmax.f32 %v589, 0.0
      %v631 = vmax.f32 %v591, 0.0
      %v632 = vmax.f32 %v593, 0.0
      %v633 = vmax.f32 %v597, 0.0
      %v634 = vmax.f32 %v599, 0.0
      %v635 = vmax.f32 %v601, 0.0
      %v636 = vmax.f32 %v603, 0.0
      %v637 = vpack.c.bf16 %v607, %v605
      %v638 = vpack.c.bf16 %v608, %v606
      %v639 = vpack.c.bf16 %v611, %v609
      %v640 = vpack.c.bf16 %v612, %v610
      %v641 = vpack.c.bf16 %v615, %v613
      %v642 = vpack.c.bf16 %v616, %v614
      %v643 = vpack.c.bf16 %v619, %v617
      %v644 = vpack.c.bf16 %v620, %v618
      %v645 = vpack.c.bf16 %v623, %v621
      %v646 = vpack.c.bf16 %v624, %v622
      %v647 = vpack.c.bf16 %v627, %v625
      %v648 = vpack.c.bf16 %v628, %v626
      %v649 = vpack.c.bf16 %v631, %v629
      %v650 = vpack.c.bf16 %v632, %v630
      %v651 = vpack.c.bf16 %v635, %v633
      %v652 = vpack.c.bf16 %v636, %v634
      %v653 = vld [vmem:[%s2] sm:$0xf]
      %v654 = vld [vmem:[%s2 + $0x4] sm:$0xf]
      %v655 = vld [vmem:[%s2 + $0x8] sm:$0xf]
      %v656 = vld [vmem:[%s2 + $0xc] sm:$0xf]
      %658 = vset.pattern.permute.xlu0 0
      %659 = vperm.xlu0 %658, %v312
      %v660 = vpop.permute.xlu0 %659
      %663 = vset.pattern.permute.xlu0 0
      %664 = vperm.xlu0 %663, %v313
      %v665 = vpop.permute.xlu0 %664
      %668 = vset.pattern.permute.xlu0 0
      %669 = vperm.xlu0 %668, %v314
      %v670 = vpop.permute.xlu0 %669
      %673 = vset.pattern.permute.xlu0 0
      %674 = vperm.xlu0 %673, %v315
      %v675 = vpop.permute.xlu0 %674
      %v681 = vunpack.c.l.b16 %v653
      %v682 = vunpack.c.l.b16 %v654
      %v683 = vunpack.c.l.b16 %v655
      %v684 = vunpack.c.l.b16 %v656
      %v685 = vpack.c.b16 %v682, %v681
      %v686 = vpack.c.b16 %v684, %v683
      %689 = vmatprep.subr.bf16.mxu0 %v652
      %690 = vmatpush1.bf16.msra.mxu0 %v651
      %691 = vmatprep.subr.bf16.mxu0 %v650
      %692 = vmatpush1.bf16.msra.mxu0 %v649
      %693 = vmatprep.subr.bf16.mxu0 %v648
      %694 = vmatpush1.bf16.msra.mxu0 %v647
      %695 = vmatprep.subr.bf16.mxu0 %v646
      %696 = vmatpush1.bf16.msra.mxu0 %v645
      %697 = vmatprep.subr.bf16.mxu0 %v644
      %698 = vmatpush1.bf16.msra.mxu0 %v643
      %699 = vmatprep.subr.bf16.mxu0 %v642
      %700 = vmatpush1.bf16.msra.mxu0 %v641
      %701 = vmatprep.subr.bf16.mxu0 %v640
      %702 = vmatpush1.bf16.msra.mxu0 %v639
      %703 = vmatprep.subr.bf16.mxu0 %v638
      %704 = vmatpush1.bf16.msra.mxu0 %v637
      %705 = vmatprep.subr.bf16.mxu0 0
      %706 = vmatpush2.bf16.msra.mxu0 0
      %707 = vmatprep.subr.bf16.mxu0 0
      %708 = vmatpush2.bf16.msra.mxu0 0
      %709 = vmatprep.subr.bf16.mxu0 0
      %710 = vmatpush2.bf16.msra.mxu0 0
      %711 = vmatprep.subr.bf16.mxu0 0
      %712 = vmatpush2.bf16.msra.mxu0 0
      %713 = vmatprep.subr.bf16.mxu0 0
      %714 = vmatpush2.bf16.msra.mxu0 0
      %715 = vmatprep.subr.bf16.mxu0 0
      %716 = vmatpush2.bf16.msra.mxu0 0
      %717 = vmatprep.subr.bf16.mxu0 0
      %718 = vmatpush2.bf16.msra.mxu0 0
      %719 = vmatprep.subr.bf16.mxu0 0
      %720 = vmatpush2.bf16.msra.mxu0 0
      %721 = vmatprep.mubr.bf16.mxu0 0
      %722 = vmatmul.mubr.bf16.gmra.mxu0 %v685
      %v723 = vpop.f32.mrf.mxu0
      %v724 = vadd.f32 %v660, %v723
      %v725 = vpop.f32.mrf.mxu0
      %v726 = vadd.f32 %v660, %v725
      %v727 = vpop.f32.mrf.mxu0
      %v728 = vadd.f32 %v665, %v727
      %v729 = vpop.f32.mrf.mxu0
      %v730 = vadd.f32 %v665, %v729
      %731 = vmatprep.mubr.bf16.mxu0 0
      %732 = vmatmul.mubr.bf16.gmra.mxu0 %v686
      %v733 = vpop.f32.mrf.mxu0
      %v734 = vadd.f32 %v670, %v733
      %v735 = vpop.f32.mrf.mxu0
      %v736 = vadd.f32 %v670, %v735
      %v737 = vpop.f32.mrf.mxu0
      %v738 = vadd.f32 %v675, %v737
      %v739 = vpop.f32.mrf.mxu0
      %v740 = vadd.f32 %v675, %v739
      %741 = vdwg.mxu0
      %v742 = vmax.f32 %v724, 0.0
      %v743 = vmax.f32 %v726, 0.0
      %v744 = vmax.f32 %v728, 0.0
      %v745 = vmax.f32 %v730, 0.0
      %v746 = vmax.f32 %v734, 0.0
      %v747 = vmax.f32 %v736, 0.0
      %v748 = vmax.f32 %v738, 0.0
      %v749 = vmax.f32 %v740, 0.0
      %v750 = vpack.c.bf16 %v744, %v742
      %v751 = vpack.c.bf16 %v745, %v743
      %v752 = vpack.c.bf16 %v748, %v746
      %v753 = vpack.c.bf16 %v749, %v747
      %v754 = vld [vmem:[%s3] sm:$0xf]
      %v755 = vld [vmem:[%s3 + $0x4] sm:$0xf]
      %v756 = vld [vmem:[%s3 + $0x8] sm:$0xf]
      %v757 = vld [vmem:[%s3 + $0xc] sm:$0xf]
      %759 = vset.pattern.permute.xlu0 0
      %760 = vperm.xlu0 %759, %v316
      %v761 = vpop.permute.xlu0 %760
      %764 = vset.pattern.permute.xlu0 0
      %765 = vperm.xlu0 %764, %v317
      %v766 = vpop.permute.xlu0 %765
      %769 = vset.pattern.permute.xlu0 0
      %770 = vperm.xlu0 %769, %v318
      %v771 = vpop.permute.xlu0 %770
      %774 = vset.pattern.permute.xlu0 0
      %775 = vperm.xlu0 %774, %v319
      %v776 = vpop.permute.xlu0 %775
      %v782 = vunpack.c.l.b16 %v754
      %v783 = vunpack.c.l.b16 %v755
      %v784 = vunpack.c.l.b16 %v756
      %v785 = vunpack.c.l.b16 %v757
      %v786 = vpack.c.b16 %v783, %v782
      %v787 = vpack.c.b16 %v785, %v784
      %vm788 = vcmask 261120
      %v790 = vsel %vm788, %v786, 0
      %v793 = vsel %vm788, %v787, 0
      %795 = vmatprep.subr.bf16.mxu0 0
      %796 = vmatpush1.bf16.msra.mxu0 0
      %797 = vmatprep.subr.bf16.mxu0 0
      %798 = vmatpush1.bf16.msra.mxu0 0
      %799 = vmatprep.subr.bf16.mxu0 0
      %800 = vmatpush1.bf16.msra.mxu0 0
      %801 = vmatprep.subr.bf16.mxu0 0
      %802 = vmatpush1.bf16.msra.mxu0 0
      %803 = vmatprep.subr.bf16.mxu0 0
      %804 = vmatpush1.bf16.msra.mxu0 0
      %805 = vmatprep.subr.bf16.mxu0 0
      %806 = vmatpush1.bf16.msra.mxu0 0
      %807 = vmatprep.subr.bf16.mxu0 %v753
      %808 = vmatpush1.bf16.msra.mxu0 %v752
      %809 = vmatprep.subr.bf16.mxu0 %v751
      %810 = vmatpush1.bf16.msra.mxu0 %v750
      %811 = vmatprep.subr.bf16.mxu0 0
      %812 = vmatpush2.bf16.msra.mxu0 0
      %813 = vmatprep.subr.bf16.mxu0 0
      %814 = vmatpush2.bf16.msra.mxu0 0
      %815 = vmatprep.subr.bf16.mxu0 0
      %816 = vmatpush2.bf16.msra.mxu0 0
      %817 = vmatprep.subr.bf16.mxu0 0
      %818 = vmatpush2.bf16.msra.mxu0 0
      %819 = vmatprep.subr.bf16.mxu0 0
      %820 = vmatpush2.bf16.msra.mxu0 0
      %821 = vmatprep.subr.bf16.mxu0 0
      %822 = vmatpush2.bf16.msra.mxu0 0
      %823 = vmatprep.subr.bf16.mxu0 0
      %824 = vmatpush2.bf16.msra.mxu0 0
      %825 = vmatprep.subr.bf16.mxu0 0
      %826 = vmatpush2.bf16.msra.mxu0 0
      %827 = vmatprep.mubr.bf16.mxu0 0
      %828 = vmatmul.mubr.bf16.gmra.mxu0 %v790
      %v829 = vpop.f32.mrf.mxu0
      %v830 = vadd.f32 %v761, %v829
      %v831 = vpop.f32.mrf.mxu0
      %v832 = vadd.f32 %v761, %v831
      %v833 = vpop.f32.mrf.mxu0
      %v834 = vadd.f32 %v766, %v833
      %v835 = vpop.f32.mrf.mxu0
      %v836 = vadd.f32 %v766, %v835
      %837 = vmatprep.mubr.bf16.mxu0 0
      %838 = vmatmul.mubr.bf16.gmra.mxu0 %v793
      %v839 = vpop.f32.mrf.mxu0
      %v840 = vadd.f32 %v771, %v839
      %v841 = vpop.f32.mrf.mxu0
      %v842 = vadd.f32 %v771, %v841
      %v843 = vpop.f32.mrf.mxu0
      %v844 = vadd.f32 %v776, %v843
      %v845 = vpop.f32.mrf.mxu0
      %v846 = vadd.f32 %v776, %v845
      %847 = vdwg.mxu0
      %v848 = vmax.f32 %v830, 0.0
      %v849 = vmax.f32 %v832, 0.0
      %v850 = vmax.f32 %v834, 0.0
      %v851 = vmax.f32 %v836, 0.0
      %v852 = vmax.f32 %v840, 0.0
      %v853 = vmax.f32 %v842, 0.0
      %v854 = vmax.f32 %v844, 0.0
      %v855 = vmax.f32 %v846, 0.0
      %v856 = vpack.c.bf16 %v850, %v848
      %v857 = vpack.c.bf16 %v851, %v849
      %v858 = vpack.c.bf16 %v854, %v852
      %v859 = vpack.c.bf16 %v855, %v853
      %v860 = vld [vmem:[%s4] sm:$0x1]
      %862 = vset.pattern.permute.xlu0 0
      %863 = vperm.xlu0 %862, %v320
      %v864 = vpop.permute.xlu0 %863
      %v867 = vsel %vm788, %v860, 0
      %869 = vmatprep.subr.bf16.mxu0 0
      %870 = vmatpush1.bf16.msra.mxu0 0
      %871 = vmatprep.subr.bf16.mxu0 0
      %872 = vmatpush1.bf16.msra.mxu0 0
      %873 = vmatprep.subr.bf16.mxu0 0
      %874 = vmatpush1.bf16.msra.mxu0 0
      %875 = vmatprep.subr.bf16.mxu0 0
      %876 = vmatpush1.bf16.msra.mxu0 0
      %877 = vmatprep.subr.bf16.mxu0 0
      %878 = vmatpush1.bf16.msra.mxu0 0
      %879 = vmatprep.subr.bf16.mxu0 0
      %880 = vmatpush1.bf16.msra.mxu0 0
      %881 = vmatprep.subr.bf16.mxu0 %v859
      %882 = vmatpush1.bf16.msra.mxu0 %v858
      %883 = vmatprep.subr.bf16.mxu0 %v857
      %884 = vmatpush1.bf16.msra.mxu0 %v856
      %885 = vmatprep.subr.bf16.mxu0 0
      %886 = vmatpush2.bf16.msra.mxu0 0
      %887 = vmatprep.subr.bf16.mxu0 0
      %888 = vmatpush2.bf16.msra.mxu0 0
      %889 = vmatprep.subr.bf16.mxu0 0
      %890 = vmatpush2.bf16.msra.mxu0 0
      %891 = vmatprep.subr.bf16.mxu0 0
      %892 = vmatpush2.bf16.msra.mxu0 0
      %893 = vmatprep.subr.bf16.mxu0 0
      %894 = vmatpush2.bf16.msra.mxu0 0
      %895 = vmatprep.subr.bf16.mxu0 0
      %896 = vmatpush2.bf16.msra.mxu0 0
      %897 = vmatprep.subr.bf16.mxu0 0
      %898 = vmatpush2.bf16.msra.mxu0 0
      %899 = vmatprep.subr.bf16.mxu0 0
      %900 = vmatpush2.bf16.msra.mxu0 0
      %901 = vmatprep.mubr.bf16.mxu0 0
      %902 = vmatmul.mubr.bf16.gmra.mxu0 %v867
      %v903 = vpop.f32.mrf.mxu0
      %v904 = vadd.f32 %v864, %v903
      %v905 = vpop.f32.mrf.mxu0
      %v906 = vadd.f32 %v864, %v905
      %v907 = vpop.f32.mrf.mxu0
      %v908 = vpop.f32.mrf.mxu0
      %909 = vdwg.mxu0
      %v912 = vcombine.low %v904, %v906
      %v914 = vunpack.c.l.s4 1983009808
      %v915 = vunpack.c.0.s8 %v914
      %v916 = vlaneseq
      %v917 = vshrl.u32 %v916, 7
      %v918 = vsub.s32 %v915, %v917
      %v919 = vrot.slane %v912, %v918
      %921 = vst [vmem:[%s289] sm:$0xf] %v919
      %s922 = smul.u32 2, %s22
      %p923 = scmp.lt.s32.totalorder %s21, 1
      %s924 = scalar_select %p923, %s21, 1
      %p925 = scmp.lt.s32.totalorder %s922, 1
      %s926 = scalar_select %p925, %s922, 1
      %s927 = smul.addr %s924, 2
      %s928 = sadd.s32 %s926, %s927
      %s929 = smul.addr %s928, 2
      %s930 = scalar_lea.vmem %s6, %s929
      // Predicated region
      $region45: #{bgrxy_mlp_forward.1} parent=43 // pred_check
        %p931 = pneg %p182
      $region46: #{bgrxy_mlp_forward.1} parent=43 // pred_check_branch
        %933 = sbr.rel (%p931) target = $region48
      $region47: #{bgrxy_mlp_forward.1} parent=43 // pred_region
        %s934 = smul.u32 2, %s22
      $region48: #{bgrxy_mlp_forward.1} parent=43 // pred_fallthru
        _
    $region44: #{bgrxy_mlp_forward.1} parent=5 // pred_fallthru
      _
    %p935 = scmp.le.s32.totalorder 2, %s12
    // Predicated region
    $region49: #{bgrxy_mlp_forward.1} parent=5 // pred_check
      %p936 = pneg %p935
    $region50: #{bgrxy_mlp_forward.1} parent=5 // pred_check_branch
      %938 = sbr.rel (%p936) target = $region52
    $region51: #{bgrxy_mlp_forward.1} parent=5 // pred_region
      %s939 = ssub.s32 %s12, 2
      // Predicated region
      $region53: #{bgrxy_mlp_forward.1} parent=51 // pred_check
        %p940 = pneg %p188
      $region54: #{bgrxy_mlp_forward.1} parent=51 // pred_check_branch
        %942 = sbr.rel (%p940) target = $region56
      $region55: #{bgrxy_mlp_forward.1} parent=51 // pred_region
        %s943 = smul.u32 2, %s24
        %p944 = scmp.lt.s32.totalorder %s23, 1
        %s945 = scalar_select %p944, %s23, 1
        %p946 = scmp.lt.s32.totalorder %s943, 1
        %s947 = scalar_select %p946, %s943, 1
        %s948 = smul.addr %s945, 2
        %s949 = sadd.s32 %s947, %s948
        %s950 = smul.addr %s949, 2
        %s951 = scalar_lea.vmem %s6, %s950
      $region56: #{bgrxy_mlp_forward.1} parent=51 // pred_fallthru
        _
    $region52: #{bgrxy_mlp_forward.1} parent=5 // pred_fallthru
      _
  $region6: #{bgrxy_mlp_forward.1} parent=0 // loop_footer
    %s16 = sadd.s32 1, %s12
  $region7: #{bgrxy_mlp_forward.1} parent=0 // loop_footer_branch
    %11 = sbr.rel target = $region3
  $region8: #{bgrxy_mlp_forward.1} parent=0 // loop_exit
    _

</llo_original>
